<compile_context>
chip_gen: v6e
topology: v6e:2x2x1
jax: 0.10.0
libtpu: 0.0.40
codegen_flags: <defaults>
</compile_context>

<pallas_src>
import jax
import jax.numpy as jnp
from jax.experimental import pallas as pl
from jax.experimental.pallas import tpu as pltpu


def _fused_mm_mul_add_kernel(x_ref, w_ref, r_ref, s_ref, o_ref):
    # v1 = X @ W : (tm, K) @ (K, N) on the MXU with f32 accumulation.
    v1 = jnp.dot(x_ref[...], w_ref[...], preferred_element_type=jnp.float32)
    # v3 = S + (X * R + v1) : fused VPU epilogue (K == N so shapes line up).
    o_ref[...] = (s_ref[...] + x_ref[...] * r_ref[...] + v1).astype(o_ref.dtype)


def model_forward(X, W, R, S, *, tm=None):
    M, K = X.shape
    Kw, N = W.shape
    assert K == Kw, "inner dims of X and W must match"
    # Semantic constraint from the module: X*R must broadcast with X@W.
    assert K == N, "K == N required so X*R (M,K) adds elementwise with X@W (M,N)"
    assert R.shape == (M, K) and S.shape == (M, N)

    if tm is None:
        # Prefer >= 2 row tiles so v7x's two TensorCores both get work; fall
        # back to a single full-M block otherwise.
        tm = M
        for cand in (128, 64, 32, 16, 8):
            if M % cand == 0 and M // cand >= 2:
                tm = cand
                break
    assert M % tm == 0, "M must tile evenly by tm"
    assert tm % 8 == 0 or tm == M, "row tile must be sublane-aligned"

    grid = (M // tm,)
    vmem = pltpu.MemorySpace.VMEM
    itemsize = 4  # f32

    cost = pl.CostEstimate(
        flops=2 * M * K * N + 3 * M * N,
        transcendentals=0,
        bytes_accessed=itemsize * (X.size + W.size + R.size + S.size + M * N),
    )

    grid_spec = pltpu.PrefetchScalarGridSpec(
        num_scalar_prefetch=0,
        grid=grid,
        in_specs=[
            # X row-tile, full K: feeds both the matmul and the epilogue.
            pl.BlockSpec((tm, K), lambda i: (i, 0), memory_space=vmem),
            # W is the same block for every row tile (re-DMA is skipped).
            pl.BlockSpec((K, N), lambda i: (0, 0), memory_space=vmem),
            pl.BlockSpec((tm, K), lambda i: (i, 0), memory_space=vmem),  # R
            pl.BlockSpec((tm, N), lambda i: (i, 0), memory_space=vmem),  # S
        ],
        out_specs=pl.BlockSpec((tm, N), lambda i: (i, 0), memory_space=vmem),
    )

    return pl.pallas_call(
        _fused_mm_mul_add_kernel,
        out_shape=jax.ShapeDtypeStruct((M, N), jnp.float32),
        grid_spec=grid_spec,
        compiler_params=pltpu.CompilerParams(
            dimension_semantics=("parallel",),
        ),
        cost_estimate=cost,
    )(X, W, R, S)


if __name__ == "__main__":
    key = jax.random.PRNGKey(0)
    kx, kw, kr, ks = jax.random.split(key, 4)

    # Small, lane-dense, tile-friendly shapes (K == N so X*R adds with X@W).
    M, K, N = 128, 256, 256
    X = jax.random.normal(kx, (M, K), dtype=jnp.float32)
    W = jax.random.normal(kw, (K, N), dtype=jnp.float32)
    R = jax.random.normal(kr, (M, K), dtype=jnp.float32)
    S = jax.random.normal(ks, (M, N), dtype=jnp.float32)

    out = jax.block_until_ready(model_forward(X, W, R, S))

    # Pure-JAX reference of the forward semantics (high-precision matmul).
    ref = S + (X * R + jnp.dot(X, W, precision=jax.lax.Precision.HIGHEST))
    assert out.shape == (M, N)
    assert jnp.allclose(out, ref, atol=2e-2, rtol=2e-2), "mismatch vs reference"

    print("KERNEL_OK")
</pallas_src>

<mosaic_0001>
module attributes {stable_mosaic.version = 11 : i64} {
  func.func @_fused_mm_mul_add_kernel(%arg0: i32, %arg1: memref<64x256xf32, #tpu.memory_space<vmem>>, %arg2: memref<256x256xf32, #tpu.memory_space<vmem>>, %arg3: memref<64x256xf32, #tpu.memory_space<vmem>>, %arg4: memref<64x256xf32, #tpu.memory_space<vmem>>, %arg5: memref<64x256xf32, #tpu.memory_space<vmem>>) attributes {dimension_semantics = [#tpu.dimension_semantics<parallel>], iteration_bounds = array<i64: 2>, scalar_prefetch = 0 : i64, scratch_operands = 0 : i64, tpu.core_type = #tpu.core_type<tc>, window_params = [{transform_indices = @transform_0, window_bounds = array<i64: 64, 256>}, {pipeline_mode = #tpu.pipeline_mode<synchronous>, transform_indices = @transform_1, window_bounds = array<i64: 256, 256>}, {transform_indices = @transform_2, window_bounds = array<i64: 64, 256>}, {transform_indices = @transform_3, window_bounds = array<i64: 64, 256>}, {transform_indices = @transform_4, window_bounds = array<i64: 64, 256>}]} {
    %c0 = arith.constant 0 : index
    %c0_0 = arith.constant 0 : index
    %0 = vector.load %arg1[%c0, %c0_0] : memref<64x256xf32, #tpu.memory_space<vmem>>, vector<64x256xf32>
    %c0_1 = arith.constant 0 : index
    %c0_2 = arith.constant 0 : index
    %1 = vector.load %arg2[%c0_1, %c0_2] : memref<256x256xf32, #tpu.memory_space<vmem>>, vector<256x256xf32>
    %cst = arith.constant dense<0.000000e+00> : vector<64x256xf32>
    %2 = tpu.matmul %0, %1, %cst {dimension_numbers = #tpu.dot_dimension_numbers<[1], [0], [0], [1], [0, 0, 1, 1], [], []>} : vector<64x256xf32>, vector<256x256xf32>, vector<64x256xf32> -> vector<64x256xf32>
    %c0_3 = arith.constant 0 : index
    %c0_4 = arith.constant 0 : index
    %3 = vector.load %arg4[%c0_3, %c0_4] : memref<64x256xf32, #tpu.memory_space<vmem>>, vector<64x256xf32>
    %c0_5 = arith.constant 0 : index
    %c0_6 = arith.constant 0 : index
    %4 = vector.load %arg1[%c0_5, %c0_6] : memref<64x256xf32, #tpu.memory_space<vmem>>, vector<64x256xf32>
    %c0_7 = arith.constant 0 : index
    %c0_8 = arith.constant 0 : index
    %5 = vector.load %arg3[%c0_7, %c0_8] : memref<64x256xf32, #tpu.memory_space<vmem>>, vector<64x256xf32>
    %6 = arith.mulf %4, %5 : vector<64x256xf32>
    %7 = arith.addf %3, %6 : vector<64x256xf32>
    %8 = arith.addf %7, %2 : vector<64x256xf32>
    %c0_9 = arith.constant 0 : index
    %c0_10 = arith.constant 0 : index
    %9 = vector.load %arg5[%c0_9, %c0_10] : memref<64x256xf32, #tpu.memory_space<vmem>>, vector<64x256xf32>
    tpu.vector_store %arg5[%c0_9, %c0_10], %8 {strides = array<i32>} : memref<64x256xf32, #tpu.memory_space<vmem>>, vector<64x256xf32>,
    return
  }
  func.func @transform_0(%arg0: i32) -> (i32, i32) {
    %c0_i32 = arith.constant 0 : i32
    %c0_i32_0 = arith.constant 0 : i32
    return %arg0, %c0_i32 : i32, i32
  }
  func.func @transform_1(%arg0: i32) -> (i32, i32) {
    %c0_i32 = arith.constant 0 : i32
    %c0_i32_0 = arith.constant 0 : i32
    %c0_i32_1 = arith.constant 0 : i32
    return %c0_i32, %c0_i32_0 : i32, i32
  }
  func.func @transform_2(%arg0: i32) -> (i32, i32) {
    %c0_i32 = arith.constant 0 : i32
    %c0_i32_0 = arith.constant 0 : i32
    return %arg0, %c0_i32 : i32, i32
  }
  func.func @transform_3(%arg0: i32) -> (i32, i32) {
    %c0_i32 = arith.constant 0 : i32
    %c0_i32_0 = arith.constant 0 : i32
    return %arg0, %c0_i32 : i32, i32
  }
  func.func @transform_4(%arg0: i32) -> (i32, i32) {
    %c0_i32 = arith.constant 0 : i32
    %c0_i32_0 = arith.constant 0 : i32
    return %arg0, %c0_i32 : i32, i32
  }
}

</mosaic_0001>

<llo_original>
// kernel: tpu_custom_call.1
$region0: #{tpu_custom_call.1}
  #allocation0 [shape = 'u32[]', space=smem, size = 0x4, offset = 0x4, fixed_abs, tag = 'smem constant byte address 0x4 - core index']
  #allocation1 [shape = 'u32[144,128]{1,0:T(1,128)}', space=vmem, size = 0x12000, scoped, tag = 'internal scratch']
  %s0 = inlined_call_operand.hbm [shape: f32[128,256], index: 0, kind: input, shape index: {}]
  %s1 = inlined_call_operand.hbm [shape: f32[256,256], index: 1, kind: input, shape index: {}]
  %s2 = inlined_call_operand.hbm [shape: f32[128,256], index: 2, kind: input, shape index: {}]
  %s3 = inlined_call_operand.hbm [shape: f32[128,256], index: 3, kind: input, shape index: {}]
  %s4 = inlined_call_operand.hbm [shape: f32[128,256], index: 4, kind: output, shape index: {}]
  %s5 = sld [smem:[#allocation0]]
  $region65: #{tpu_custom_call.1} parent=0
    _
  %s7 = ssub.s32 1, %s5
  %s8 = scalar_select 0, %s7, %s5
  $region1: #{tpu_custom_call.1} parent=0
    #allocation2 [shape = 'u8[131072]{0}', space=vmem, size = 0x20000, scoped, tag = 'input window, operand 0']
    #allocation3 [shape = 's32[2]{0}', space=sflag, size = 0x8, scoped, tag = 'scoped memory for tpu_custom_call.1']
    #allocation4 [shape = 's32[2]{0}', space=sflag, size = 0x8, scoped, tag = 'scoped memory for tpu_custom_call.1']
    #allocation5 [shape = 'u8[262144]{0}', space=vmem, size = 0x40000, scoped, tag = 'input window, operand 1, single buffered']
    #allocation6 [shape = 's32[1]{0}', space=sflag, size = 0x4, scoped, tag = 'scoped memory for tpu_custom_call.1']
    #allocation7 [shape = 'u8[131072]{0}', space=vmem, size = 0x20000, scoped, tag = 'input window, operand 2']
    #allocation8 [shape = 'u8[131072]{0}', space=vmem, size = 0x20000, scoped, tag = 'input window, operand 3']
    #allocation9 [shape = 'u8[131072]{0}', space=vmem, size = 0x20000, scoped, tag = 'output window, operand 0']
    %9 = vsyncpa [#allocation3], 0
    %s10 = scalar_lea.sflag [#allocation3], 1
    %11 = vsyncpa %s10, 0
    %12 = vsyncpa [#allocation6], 0
    %13 = vsyncpa [#allocation4], 0
    %s14 = scalar_lea.sflag [#allocation4], 1
    %15 = vsyncpa %s14, 0
    loop: start=0, step=1, limit=4
    $region2: #{tpu_custom_call.1} parent=1 // loop_pre_header
      _
    $region3: #{tpu_custom_call.1} parent=1 // loop_header
      %s17 = sphi 0, %s21
      %p18 = scmp.ge.s32.totalorder %s17, 4
      %s27 = sphi 0, %s29
      %s30 = sphi 0, %s27
      %s31 = sphi 0, %s30
      %s47 = sphi 0, %s31
      %s51 = sphi 0, %s51
      %s53 = sphi 0, %s51
      %s54 = sphi 0, %s53
      %s68 = sphi 0, %s54
      %s74 = sphi 0, %s76
      %s77 = sphi 0, %s74
      %s78 = sphi 0, %s77
      %s94 = sphi 0, %s78
      %s100 = sphi 0, %s102
      %s103 = sphi 0, %s100
      %s104 = sphi 0, %s103
      %s120 = sphi 0, %s104
      %s126 = sphi 0, %s128
      %s129 = sphi 0, %s126
      %s130 = sphi 0, %s129
      %s146 = sphi 0, %s130
    $region4: #{tpu_custom_call.1} parent=1 // loop_header_branch
      %20 = sbr.rel (%p18) target = $region8
    $region5: #{tpu_custom_call.1} parent=1 // loop_body
      %s22 = ssub.s32 %s17, 1
      %s23 = ssub.s32 %s17, 2
      %s24 = sadd.s32 %s17, 1
      %s25 = ssub.s32 %s17, %s24
      %p26 = scmp.eq.s32.totalorder %s25, 0
      %s28 = sadd.s32 %s27, 1
      %s29 = scalar_select %p26, %s27, %s28
      %p32 = pneg %p26
      %p33 = scmp.eq.s32.totalorder %s17, 1
      %p34 = por %p32, %p33
      %p35 = scmp.ne.s32.totalorder %s27, %s30
      %p36 = scmp.eq.s32.totalorder %s17, 0
      %p37 = por %p35, %p36
      %p38 = scmp.ne.s32.totalorder %s27, %s30
      %p39 = scmp.eq.s32.totalorder %s22, 1
      %p40 = por %p38, %p39
      %p41 = scmp.ne.s32.totalorder %s30, %s31
      %p42 = scmp.eq.s32.totalorder %s22, 0
      %p43 = por %p41, %p42
      %p44 = scmp.ne.s32.totalorder %s30, %s31
      %p45 = scmp.eq.s32.totalorder %s23, 1
      %p46 = por %p44, %p45
      %p48 = scmp.ne.s32.totalorder %s31, %s47
      %p49 = scmp.eq.s32.totalorder %s23, 0
      %p50 = por %p48, %p49
      %s52 = sadd.s32 %s51, 1
      %p55 = scmp.eq.s32.totalorder %s17, 1
      %p56 = scmp.ne.s32.totalorder %s51, %s53
      %p57 = scmp.eq.s32.totalorder %s17, 0
      %p58 = por %p56, %p57
      %p59 = scmp.ne.s32.totalorder %s51, %s53
      %p60 = scmp.eq.s32.totalorder %s22, 1
      %p61 = por %p59, %p60
      %p62 = scmp.ne.s32.totalorder %s53, %s54
      %p63 = scmp.eq.s32.totalorder %s22, 0
      %p64 = por %p62, %p63
      %p65 = scmp.ne.s32.totalorder %s53, %s54
      %p66 = scmp.eq.s32.totalorder %s23, 1
      %p67 = por %p65, %p66
      %p69 = scmp.ne.s32.totalorder %s54, %s68
      %p70 = scmp.eq.s32.totalorder %s23, 0
      %p71 = por %p69, %p70
      %s72 = ssub.s32 %s17, %s24
      %p73 = scmp.eq.s32.totalorder %s72, 0
      %s75 = sadd.s32 %s74, 1
      %s76 = scalar_select %p73, %s74, %s75
      %p79 = pneg %p73
      %p80 = scmp.eq.s32.totalorder %s17, 1
      %p81 = por %p79, %p80
      %p82 = scmp.ne.s32.totalorder %s74, %s77
      %p83 = scmp.eq.s32.totalorder %s17, 0
      %p84 = por %p82, %p83
      %p85 = scmp.ne.s32.totalorder %s74, %s77
      %p86 = scmp.eq.s32.totalorder %s22, 1
      %p87 = por %p85, %p86
      %p88 = scmp.ne.s32.totalorder %s77, %s78
      %p89 = scmp.eq.s32.totalorder %s22, 0
      %p90 = por %p88, %p89
      %p91 = scmp.ne.s32.totalorder %s77, %s78
      %p92 = scmp.eq.s32.totalorder %s23, 1
      %p93 = por %p91, %p92
      %p95 = scmp.ne.s32.totalorder %s78, %s94
      %p96 = scmp.eq.s32.totalorder %s23, 0
      %p97 = por %p95, %p96
      %s98 = ssub.s32 %s17, %s24
      %p99 = scmp.eq.s32.totalorder %s98, 0
      %s101 = sadd.s32 %s100, 1
      %s102 = scalar_select %p99, %s100, %s101
      %p105 = pneg %p99
      %p106 = scmp.eq.s32.totalorder %s17, 1
      %p107 = por %p105, %p106
      %p108 = scmp.ne.s32.totalorder %s100, %s103
      %p109 = scmp.eq.s32.totalorder %s17, 0
      %p110 = por %p108, %p109
      %p111 = scmp.ne.s32.totalorder %s100, %s103
      %p112 = scmp.eq.s32.totalorder %s22, 1
      %p113 = por %p111, %p112
      %p114 = scmp.ne.s32.totalorder %s103, %s104
      %p115 = scmp.eq.s32.totalorder %s22, 0
      %p116 = por %p114, %p115
      %p117 = scmp.ne.s32.totalorder %s103, %s104
      %p118 = scmp.eq.s32.totalorder %s23, 1
      %p119 = por %p117, %p118
      %p121 = scmp.ne.s32.totalorder %s104, %s120
      %p122 = scmp.eq.s32.totalorder %s23, 0
      %p123 = por %p121, %p122
      %s124 = ssub.s32 %s17, %s24
      %p125 = scmp.eq.s32.totalorder %s124, 0
      %s127 = sadd.s32 %s126, 1
      %s128 = scalar_select %p125, %s126, %s127
      %p131 = pneg %p125
      %p132 = scmp.eq.s32.totalorder %s17, 1
      %p133 = por %p131, %p132
      %p134 = scmp.ne.s32.totalorder %s126, %s129
      %p135 = scmp.eq.s32.totalorder %s17, 0
      %p136 = por %p134, %p135
      %p137 = scmp.ne.s32.totalorder %s126, %s129
      %p138 = scmp.eq.s32.totalorder %s22, 1
      %p139 = por %p137, %p138
      %p140 = scmp.ne.s32.totalorder %s129, %s130
      %p141 = scmp.eq.s32.totalorder %s22, 0
      %p142 = por %p140, %p141
      %p143 = scmp.ne.s32.totalorder %s129, %s130
      %p144 = scmp.eq.s32.totalorder %s23, 1
      %p145 = por %p143, %p144
      %p147 = scmp.ne.s32.totalorder %s130, %s146
      %p148 = scmp.eq.s32.totalorder %s23, 0
      %p149 = por %p147, %p148
      %p150 = scmp.le.s32.totalorder 1, %s17
      %p151 = scmp.lt.s32.totalorder %s17, 3
      %p152 = pnand %p150, %p151
      %p153 = pneg %p152
      // Predicated region
      $region9: #{tpu_custom_call.1} parent=5 // pred_check
        _
      $region10: #{tpu_custom_call.1} parent=5 // pred_check_branch
        %155 = sbr.rel (%p152) target = $region12
      $region11: #{tpu_custom_call.1} parent=5 // pred_region
        %s156 = ssub.s32 %s17, 1
        // Predicated region
        $region13: #{tpu_custom_call.1} parent=11 // pred_check
          %p157 = pneg %p64
        $region14: #{tpu_custom_call.1} parent=11 // pred_check_branch
          %159 = sbr.rel (%p157) target = $region16
        $region15: #{tpu_custom_call.1} parent=11 // pred_region
          %s161 = ssub.s32 8192, 8192
          %162 = vsyncadd [#allocation6], %s161
          %s163 = sshll.u32 [#allocation5], 4
          %s164 = int_to_ptr.vmem [resolvable:$true] %s163
          %169 = dma.hbm_to_vmem [thread:$0]  %s1, 8192, %s164, [#allocation6], 256, 256, 16
        $region16: #{tpu_custom_call.1} parent=11 // pred_fallthru
          _
      $region12: #{tpu_custom_call.1} parent=5 // pred_fallthru
        _
      %p170 = scmp.lt.s32.totalorder %s17, 2
      // Predicated region
      $region17: #{tpu_custom_call.1} parent=5 // pred_check
        %p171 = pneg %p170
      $region18: #{tpu_custom_call.1} parent=5 // pred_check_branch
        %173 = sbr.rel (%p171) target = $region20
      $region19: #{tpu_custom_call.1} parent=5 // pred_region
        // Predicated region
        $region21: #{tpu_custom_call.1} parent=19 // pred_check
          %p174 = pneg %p37
        $region22: #{tpu_custom_call.1} parent=19 // pred_check_branch
          %176 = sbr.rel (%p174) target = $region24
        $region23: #{tpu_custom_call.1} parent=19 // pred_region
          %s177 = sand.u32 %s17, 1
          %s178 = scalar_lea.sflag [#allocation3], %s177
          %s179 = sand.u32 %s27, 1
          %s180 = smul.addr %s179, 128
          %s181 = scalar_lea.vmem [#allocation2], %s180
          %s182 = smul.u32 8, %s17
          %s184 = ssub.s32 2048, 2048
          %185 = vsyncadd %s178, %s184
          %s186 = smul.addr %s182, 2
          %s187 = smul.addr %s186, 128
          %s188 = scalar_lea.hbm %s0, %s187
          %s189 = sshll.u32 %s181, 4
          %s190 = int_to_ptr.vmem [resolvable:$true] %s189
          %195 = dma.hbm_to_vmem [thread:$0]  %s188, 2048, %s190, %s178, 256, 256, 16
        $region24: #{tpu_custom_call.1} parent=19 // pred_fallthru
          _
        // Predicated region
        $region25: #{tpu_custom_call.1} parent=19 // pred_check
          %p196 = pneg %p84
        $region26: #{tpu_custom_call.1} parent=19 // pred_check_branch
          %198 = sbr.rel (%p196) target = $region28
        $region27: #{tpu_custom_call.1} parent=19 // pred_region
          %s199 = sand.u32 %s17, 1
          %s200 = scalar_lea.sflag [#allocation3], %s199
          %s201 = sand.u32 %s74, 1
          %s202 = smul.addr %s201, 128
          %s203 = scalar_lea.vmem [#allocation7], %s202
          %s204 = smul.u32 8, %s17
          %s206 = ssub.s32 2048, 2048
          %207 = vsyncadd %s200, %s206
          %s208 = smul.addr %s204, 2
          %s209 = smul.addr %s208, 128
          %s210 = scalar_lea.hbm %s2, %s209
          %s211 = sshll.u32 %s203, 4
          %s212 = int_to_ptr.vmem [resolvable:$true] %s211
          %217 = dma.hbm_to_vmem [thread:$0]  %s210, 2048, %s212, %s200, 256, 256, 16
        $region28: #{tpu_custom_call.1} parent=19 // pred_fallthru
          _
        // Predicated region
        $region29: #{tpu_custom_call.1} parent=19 // pred_check
          %p218 = pneg %p110
        $region30: #{tpu_custom_call.1} parent=19 // pred_check_branch
          %220 = sbr.rel (%p218) target = $region32
        $region31: #{tpu_custom_call.1} parent=19 // pred_region
          %s221 = sand.u32 %s17, 1
          %s222 = scalar_lea.sflag [#allocation3], %s221
          %s223 = sand.u32 %s100, 1
          %s224 = smul.addr %s223, 128
          %s225 = scalar_lea.vmem [#allocation8], %s224
          %s226 = smul.u32 8, %s17
          %s228 = ssub.s32 2048, 2048
          %229 = vsyncadd %s222, %s228
          %s230 = smul.addr %s226, 2
          %s231 = smul.addr %s230, 128
          %s232 = scalar_lea.hbm %s3, %s231
          %s233 = sshll.u32 %s225, 4
          %s234 = int_to_ptr.vmem [resolvable:$true] %s233
          %239 = dma.hbm_to_vmem [thread:$0]  %s232, 2048, %s234, %s222, 256, 256, 16
        $region32: #{tpu_custom_call.1} parent=19 // pred_fallthru
          _
      $region20: #{tpu_custom_call.1} parent=5 // pred_fallthru
        _
      %p240 = scmp.le.s32.totalorder 1, %s17
      %p241 = scmp.lt.s32.totalorder %s17, 3
      %p242 = pnand %p240, %p241
      %p243 = pneg %p242
      // Predicated region
      $region33: #{tpu_custom_call.1} parent=5 // pred_check
        _
      $region34: #{tpu_custom_call.1} parent=5 // pred_check_branch
        %245 = sbr.rel (%p242) target = $region36
      $region35: #{tpu_custom_call.1} parent=5 // pred_region
        %s246 = ssub.s32 %s17, 1
        %s247 = sand.u32 %s22, 1
        %s248 = scalar_lea.sflag [#allocation3], %s247
        %s249 = sand.u32 %s30, 1
        %s250 = smul.addr %s249, 128
        %s251 = scalar_lea.vmem [#allocation2], %s250
        // Predicated region
        $region37: #{tpu_custom_call.1} parent=35 // pred_check
          %p252 = pneg %p43
        $region38: #{tpu_custom_call.1} parent=35 // pred_check_branch
          %254 = sbr.rel (%p252) target = $region40
        $region39: #{tpu_custom_call.1} parent=35 // pred_region
          %255 = dma.done %s248, 2048
        $region40: #{tpu_custom_call.1} parent=35 // pred_fallthru
          _
        // Predicated region
        $region41: #{tpu_custom_call.1} parent=35 // pred_check
          %p256 = pneg %p64
        $region42: #{tpu_custom_call.1} parent=35 // pred_check_branch
          %258 = sbr.rel (%p256) target = $region44
        $region43: #{tpu_custom_call.1} parent=35 // pred_region
          %259 = dma.done [#allocation6], 8192
        $region44: #{tpu_custom_call.1} parent=35 // pred_fallthru
          _
        %s260 = sand.u32 %s22, 1
        %s261 = scalar_lea.sflag [#allocation3], %s260
        %s262 = sand.u32 %s77, 1
        %s263 = smul.addr %s262, 128
        %s264 = scalar_lea.vmem [#allocation7], %s263
        // Predicated region
        $region45: #{tpu_custom_call.1} parent=35 // pred_check
          %p265 = pneg %p90
        $region46: #{tpu_custom_call.1} parent=35 // pred_check_branch
          %267 = sbr.rel (%p265) target = $region48
        $region47: #{tpu_custom_call.1} parent=35 // pred_region
          %268 = dma.done %s261, 2048
        $region48: #{tpu_custom_call.1} parent=35 // pred_fallthru
          _
        %s269 = sand.u32 %s22, 1
        %s270 = scalar_lea.sflag [#allocation3], %s269
        %s271 = sand.u32 %s103, 1
        %s272 = smul.addr %s271, 128
        %s273 = scalar_lea.vmem [#allocation8], %s272
        // Predicated region
        $region49: #{tpu_custom_call.1} parent=35 // pred_check
          %p274 = pneg %p116
        $region50: #{tpu_custom_call.1} parent=35 // pred_check_branch
          %276 = sbr.rel (%p274) target = $region52
        $region51: #{tpu_custom_call.1} parent=35 // pred_region
          %277 = dma.done %s270, 2048
        $region52: #{tpu_custom_call.1} parent=35 // pred_fallthru
          _
        %s278 = sand.u32 %s22, 1
        %s279 = scalar_lea.sflag [#allocation3], %s278
        %s280 = sand.u32 %s30, 1
        %s281 = smul.addr %s280, 128
        %s282 = scalar_lea.vmem [#allocation2], %s281
        %p283 = pneg %p43
        %p284 = pneg %p40
        %p285 = pneg %p64
        %p286 = pneg %p61
        %s287 = sand.u32 %s22, 1
        %s288 = scalar_lea.sflag [#allocation3], %s287
        %s289 = sand.u32 %s77, 1
        %s290 = smul.addr %s289, 128
        %s291 = scalar_lea.vmem [#allocation7], %s290
        %p292 = pneg %p90
        %p293 = pneg %p87
        %s294 = sand.u32 %s22, 1
        %s295 = scalar_lea.sflag [#allocation3], %s294
        %s296 = sand.u32 %s103, 1
        %s297 = smul.addr %s296, 128
        %s298 = scalar_lea.vmem [#allocation8], %s297
        %p299 = pneg %p116
        %p300 = pneg %p113
        %p301 = pneg %p142
        %p302 = pneg %p139
        %s303 = sand.u32 %s129, 1
        %s304 = scalar_lea.sflag [#allocation4], %s303
        %s305 = sand.u32 %s129, 1
        %s306 = smul.addr %s305, 128
        %s307 = scalar_lea.vmem [#allocation9], %s306
        %s308 = smul.u32 8, %s22
        %s309 = smul.u32 8, %s22
        %s310 = smul.u32 8, %s22
        %s311 = smul.u32 8, %s22
        %v312 = vld [vmem:[%s251] sm:$0xff]
        %v313 = vld [vmem:[%s251 + $0x8] sm:$0xff]
        %v314 = vld [vmem:[%s251 + $0x10] sm:$0xff]
        %v315 = vld [vmem:[%s251 + $0x18] sm:$0xff]
        %v316 = vld [vmem:[%s251 + $0x20] sm:$0xff]
        %v317 = vld [vmem:[%s251 + $0x28] sm:$0xff]
        %v318 = vld [vmem:[%s251 + $0x30] sm:$0xff]
        %v319 = vld [vmem:[%s251 + $0x38] sm:$0xff]
        %v320 = vld [vmem:[%s251 + $0x40] sm:$0xff]
        %v321 = vld [vmem:[%s251 + $0x48] sm:$0xff]
        %v322 = vld [vmem:[%s251 + $0x50] sm:$0xff]
        %v323 = vld [vmem:[%s251 + $0x58] sm:$0xff]
        %v324 = vld [vmem:[%s251 + $0x60] sm:$0xff]
        %v325 = vld [vmem:[%s251 + $0x68] sm:$0xff]
        %v326 = vld [vmem:[%s251 + $0x70] sm:$0xff]
        %v327 = vld [vmem:[%s251 + $0x78] sm:$0xff]
        %v328 = vld [vmem:[#allocation5] sm:$0xff]
        %v329 = vld [vmem:[#allocation5 + $0x8] sm:$0xff]
        %v330 = vld [vmem:[#allocation5 + $0x10] sm:$0xff]
        %v331 = vld [vmem:[#allocation5 + $0x18] sm:$0xff]
        %v332 = vld [vmem:[#allocation5 + $0x20] sm:$0xff]
        %v333 = vld [vmem:[#allocation5 + $0x28] sm:$0xff]
        %v334 = vld [vmem:[#allocation5 + $0x30] sm:$0xff]
        %v335 = vld [vmem:[#allocation5 + $0x38] sm:$0xff]
        %v336 = vld [vmem:[#allocation5 + $0x40] sm:$0xff]
        %v337 = vld [vmem:[#allocation5 + $0x48] sm:$0xff]
        %v338 = vld [vmem:[#allocation5 + $0x50] sm:$0xff]
        %v339 = vld [vmem:[#allocation5 + $0x58] sm:$0xff]
        %v340 = vld [vmem:[#allocation5 + $0x60] sm:$0xff]
        %v341 = vld [vmem:[#allocation5 + $0x68] sm:$0xff]
        %v342 = vld [vmem:[#allocation5 + $0x70] sm:$0xff]
        %v343 = vld [vmem:[#allocation5 + $0x78] sm:$0xff]
        %v344 = vld [vmem:[#allocation5 + $0x80] sm:$0xff]
        %v345 = vld [vmem:[#allocation5 + $0x88] sm:$0xff]
        %v346 = vld [vmem:[#allocation5 + $0x90] sm:$0xff]
        %v347 = vld [vmem:[#allocation5 + $0x98] sm:$0xff]
        %v348 = vld [vmem:[#allocation5 + $0xa0] sm:$0xff]
        %v349 = vld [vmem:[#allocation5 + $0xa8] sm:$0xff]
        %v350 = vld [vmem:[#allocation5 + $0xb0] sm:$0xff]
        %v351 = vld [vmem:[#allocation5 + $0xb8] sm:$0xff]
        %v352 = vld [vmem:[#allocation5 + $0xc0] sm:$0xff]
        %v353 = vld [vmem:[#allocation5 + $0xc8] sm:$0xff]
        %v354 = vld [vmem:[#allocation5 + $0xd0] sm:$0xff]
        %v355 = vld [vmem:[#allocation5 + $0xd8] sm:$0xff]
        %v356 = vld [vmem:[#allocation5 + $0xe0] sm:$0xff]
        %v357 = vld [vmem:[#allocation5 + $0xe8] sm:$0xff]
        %v358 = vld [vmem:[#allocation5 + $0xf0] sm:$0xff]
        %v359 = vld [vmem:[#allocation5 + $0xf8] sm:$0xff]
        %v360 = vld [vmem:[#allocation5 + $0x100] sm:$0xff]
        %v361 = vld [vmem:[#allocation5 + $0x108] sm:$0xff]
        %v362 = vld [vmem:[#allocation5 + $0x110] sm:$0xff]
        %v363 = vld [vmem:[#allocation5 + $0x118] sm:$0xff]
        %v364 = vld [vmem:[#allocation5 + $0x120] sm:$0xff]
        %v365 = vld [vmem:[#allocation5 + $0x128] sm:$0xff]
        %v366 = vld [vmem:[#allocation5 + $0x130] sm:$0xff]
        %v367 = vld [vmem:[#allocation5 + $0x138] sm:$0xff]
        %v368 = vld [vmem:[#allocation5 + $0x140] sm:$0xff]
        %v369 = vld [vmem:[#allocation5 + $0x148] sm:$0xff]
        %v370 = vld [vmem:[#allocation5 + $0x150] sm:$0xff]
        %v371 = vld [vmem:[#allocation5 + $0x158] sm:$0xff]
        %v372 = vld [vmem:[#allocation5 + $0x160] sm:$0xff]
        %v373 = vld [vmem:[#allocation5 + $0x168] sm:$0xff]
        %v374 = vld [vmem:[#allocation5 + $0x170] sm:$0xff]
        %v375 = vld [vmem:[#allocation5 + $0x178] sm:$0xff]
        %v376 = vld [vmem:[#allocation5 + $0x180] sm:$0xff]
        %v377 = vld [vmem:[#allocation5 + $0x188] sm:$0xff]
        %v378 = vld [vmem:[#allocation5 + $0x190] sm:$0xff]
        %v379 = vld [vmem:[#allocation5 + $0x198] sm:$0xff]
        %v380 = vld [vmem:[#allocation5 + $0x1a0] sm:$0xff]
        %v381 = vld [vmem:[#allocation5 + $0x1a8] sm:$0xff]
        %v382 = vld [vmem:[#allocation5 + $0x1b0] sm:$0xff]
        %v383 = vld [vmem:[#allocation5 + $0x1b8] sm:$0xff]
        %v384 = vld [vmem:[#allocation5 + $0x1c0] sm:$0xff]
        %v385 = vld [vmem:[#allocation5 + $0x1c8] sm:$0xff]
        %v386 = vld [vmem:[#allocation5 + $0x1d0] sm:$0xff]
        %v387 = vld [vmem:[#allocation5 + $0x1d8] sm:$0xff]
        %v388 = vld [vmem:[#allocation5 + $0x1e0] sm:$0xff]
        %v389 = vld [vmem:[#allocation5 + $0x1e8] sm:$0xff]
        %v390 = vld [vmem:[#allocation5 + $0x1f0] sm:$0xff]
        %v391 = vld [vmem:[#allocation5 + $0x1f8] sm:$0xff]
        %392 = vmatprep.subr.mxu0 %v359
        %393 = vmatpush1.msra.mxu0 %v358
        %394 = vmatprep.subr.mxu0 %v357
        %395 = vmatpush1.msra.mxu0 %v356
        %396 = vmatprep.subr.mxu0 %v355
        %397 = vmatpush1.msra.mxu0 %v354
        %398 = vmatprep.subr.mxu0 %v353
        %399 = vmatpush1.msra.mxu0 %v352
        %400 = vmatprep.subr.mxu0 %v351
        %401 = vmatpush1.msra.mxu0 %v350
        %402 = vmatprep.subr.mxu0 %v349
        %403 = vmatpush1.msra.mxu0 %v348
        %404 = vmatprep.subr.mxu0 %v347
        %405 = vmatpush1.msra.mxu0 %v346
        %406 = vmatprep.subr.mxu0 %v345
        %407 = vmatpush1.msra.mxu0 %v344
        %408 = vmatprep.subr.mxu0 %v343
        %409 = vmatpush1.msra.mxu0 %v342
        %410 = vmatprep.subr.mxu0 %v341
        %411 = vmatpush1.msra.mxu0 %v340
        %412 = vmatprep.subr.mxu0 %v339
        %413 = vmatpush1.msra.mxu0 %v338
        %414 = vmatprep.subr.mxu0 %v337
        %415 = vmatpush1.msra.mxu0 %v336
        %416 = vmatprep.subr.mxu0 %v335
        %417 = vmatpush1.msra.mxu0 %v334
        %418 = vmatprep.subr.mxu0 %v333
        %419 = vmatpush1.msra.mxu0 %v332
        %420 = vmatprep.subr.mxu0 %v331
        %421 = vmatpush1.msra.mxu0 %v330
        %422 = vmatprep.subr.mxu0 %v329
        %423 = vmatpush1.msra.mxu0 %v328
        %424 = vmatprep.subr.mxu0 %v391
        %425 = vmatpush2.msra.mxu0 %v390
        %426 = vmatprep.subr.mxu0 %v389
        %427 = vmatpush2.msra.mxu0 %v388
        %428 = vmatprep.subr.mxu0 %v387
        %429 = vmatpush2.msra.mxu0 %v386
        %430 = vmatprep.subr.mxu0 %v385
        %431 = vmatpush2.msra.mxu0 %v384
        %432 = vmatprep.subr.mxu0 %v383
        %433 = vmatpush2.msra.mxu0 %v382
        %434 = vmatprep.subr.mxu0 %v381
        %435 = vmatpush2.msra.mxu0 %v380
        %436 = vmatprep.subr.mxu0 %v379
        %437 = vmatpush2.msra.mxu0 %v378
        %438 = vmatprep.subr.mxu0 %v377
        %439 = vmatpush2.msra.mxu0 %v376
        %440 = vmatprep.subr.mxu0 %v375
        %441 = vmatpush2.msra.mxu0 %v374
        %442 = vmatprep.subr.mxu0 %v373
        %443 = vmatpush2.msra.mxu0 %v372
        %444 = vmatprep.subr.mxu0 %v371
        %445 = vmatpush2.msra.mxu0 %v370
        %446 = vmatprep.subr.mxu0 %v369
        %447 = vmatpush2.msra.mxu0 %v368
        %448 = vmatprep.subr.mxu0 %v367
        %449 = vmatpush2.msra.mxu0 %v366
        %450 = vmatprep.subr.mxu0 %v365
        %451 = vmatpush2.msra.mxu0 %v364
        %452 = vmatprep.subr.mxu0 %v363
        %453 = vmatpush2.msra.mxu0 %v362
        %454 = vmatprep.subr.mxu0 %v361
        %455 = vmatpush2.msra.mxu0 %v360
        %456 = vmatprep.mubr.f32.mxu0 %v313
        %457 = vmatmul.mubr.f32.gmra.mxu0 %v312
        %v458 = vpop.f32.mrf.mxu0
        %v459 = vadd.f32 0.0, %v458
        %v460 = vpop.f32.mrf.mxu0
        %v461 = vadd.f32 0.0, %v460
        %462 = vmatprep.mubr.f32.mxu0 %v315
        %463 = vmatmul.mubr.f32.gmra.mxu0 %v314
        %v464 = vpop.f32.mrf.mxu0
        %v465 = vadd.f32 0.0, %v464
        %v466 = vpop.f32.mrf.mxu0
        %v467 = vadd.f32 0.0, %v466
        %468 = vmatprep.mubr.f32.mxu0 %v317
        %469 = vmatmul.mubr.f32.gmra.mxu0 %v316
        %v470 = vpop.f32.mrf.mxu0
        %v471 = vadd.f32 0.0, %v470
        %v472 = vpop.f32.mrf.mxu0
        %v473 = vadd.f32 0.0, %v472
        %474 = vmatprep.mubr.f32.mxu0 %v319
        %475 = vmatmul.mubr.f32.gmra.mxu0 %v318
        %v476 = vpop.f32.mrf.mxu0
        %v477 = vadd.f32 0.0, %v476
        %v478 = vpop.f32.mrf.mxu0
        %v479 = vadd.f32 0.0, %v478
        %480 = vmatprep.mubr.f32.mxu0 %v321
        %481 = vmatmul.mubr.f32.gmra.mxu0 %v320
        %v482 = vpop.f32.mrf.mxu0
        %v483 = vadd.f32 0.0, %v482
        %v484 = vpop.f32.mrf.mxu0
        %v485 = vadd.f32 0.0, %v484
        %486 = vmatprep.mubr.f32.mxu0 %v323
        %487 = vmatmul.mubr.f32.gmra.mxu0 %v322
        %v488 = vpop.f32.mrf.mxu0
        %v489 = vadd.f32 0.0, %v488
        %v490 = vpop.f32.mrf.mxu0
        %v491 = vadd.f32 0.0, %v490
        %492 = vmatprep.mubr.f32.mxu0 %v325
        %493 = vmatmul.mubr.f32.gmra.mxu0 %v324
        %v494 = vpop.f32.mrf.mxu0
        %v495 = vadd.f32 0.0, %v494
        %v496 = vpop.f32.mrf.mxu0
        %v497 = vadd.f32 0.0, %v496
        %498 = vmatprep.mubr.f32.mxu0 %v327
        %499 = vmatmul.mubr.f32.gmra.mxu0 %v326
        %v500 = vpop.f32.mrf.mxu0
        %v501 = vadd.f32 0.0, %v500
        %v502 = vpop.f32.mrf.mxu0
        %v503 = vadd.f32 0.0, %v502
        %504 = vdwg.mxu0
        %v505 = vld [vmem:[%s273] sm:$0xff]
        %v506 = vld [vmem:[%s273 + $0x8] sm:$0xff]
        %v507 = vld [vmem:[%s273 + $0x10] sm:$0xff]
        %v508 = vld [vmem:[%s273 + $0x18] sm:$0xff]
        %v509 = vld [vmem:[%s273 + $0x20] sm:$0xff]
        %v510 = vld [vmem:[%s273 + $0x28] sm:$0xff]
        %v511 = vld [vmem:[%s273 + $0x30] sm:$0xff]
        %v512 = vld [vmem:[%s273 + $0x38] sm:$0xff]
        %v513 = vld [vmem:[%s273 + $0x40] sm:$0xff]
        %v514 = vld [vmem:[%s273 + $0x48] sm:$0xff]
        %v515 = vld [vmem:[%s273 + $0x50] sm:$0xff]
        %v516 = vld [vmem:[%s273 + $0x58] sm:$0xff]
        %v517 = vld [vmem:[%s273 + $0x60] sm:$0xff]
        %v518 = vld [vmem:[%s273 + $0x68] sm:$0xff]
        %v519 = vld [vmem:[%s273 + $0x70] sm:$0xff]
        %v520 = vld [vmem:[%s273 + $0x78] sm:$0xff]
        %v521 = vld [vmem:[%s264] sm:$0xff]
        %v522 = vld [vmem:[%s264 + $0x8] sm:$0xff]
        %v523 = vld [vmem:[%s264 + $0x10] sm:$0xff]
        %v524 = vld [vmem:[%s264 + $0x18] sm:$0xff]
        %v525 = vld [vmem:[%s264 + $0x20] sm:$0xff]
        %v526 = vld [vmem:[%s264 + $0x28] sm:$0xff]
        %v527 = vld [vmem:[%s264 + $0x30] sm:$0xff]
        %v528 = vld [vmem:[%s264 + $0x38] sm:$0xff]
        %v529 = vld [vmem:[%s264 + $0x40] sm:$0xff]
        %v530 = vld [vmem:[%s264 + $0x48] sm:$0xff]
        %v531 = vld [vmem:[%s264 + $0x50] sm:$0xff]
        %v532 = vld [vmem:[%s264 + $0x58] sm:$0xff]
        %v533 = vld [vmem:[%s264 + $0x60] sm:$0xff]
        %v534 = vld [vmem:[%s264 + $0x68] sm:$0xff]
        %v535 = vld [vmem:[%s264 + $0x70] sm:$0xff]
        %v536 = vld [vmem:[%s264 + $0x78] sm:$0xff]
        %v537 = vmul.f32 %v312, %v521
        %v538 = vmul.f32 %v313, %v522
        %v539 = vmul.f32 %v314, %v523
        %v540 = vmul.f32 %v315, %v524
        %v541 = vmul.f32 %v316, %v525
        %v542 = vmul.f32 %v317, %v526
        %v543 = vmul.f32 %v318, %v527
        %v544 = vmul.f32 %v319, %v528
        %v545 = vmul.f32 %v320, %v529
        %v546 = vmul.f32 %v321, %v530
        %v547 = vmul.f32 %v322, %v531
        %v548 = vmul.f32 %v323, %v532
        %v549 = vmul.f32 %v324, %v533
        %v550 = vmul.f32 %v325, %v534
        %v551 = vmul.f32 %v326, %v535
        %v552 = vmul.f32 %v327, %v536
        %v553 = vadd.f32 %v505, %v537
        %v554 = vadd.f32 %v506, %v538
        %v555 = vadd.f32 %v507, %v539
        %v556 = vadd.f32 %v508, %v540
        %v557 = vadd.f32 %v509, %v541
        %v558 = vadd.f32 %v510, %v542
        %v559 = vadd.f32 %v511, %v543
        %v560 = vadd.f32 %v512, %v544
        %v561 = vadd.f32 %v513, %v545
        %v562 = vadd.f32 %v514, %v546
        %v563 = vadd.f32 %v515, %v547
        %v564 = vadd.f32 %v516, %v548
        %v565 = vadd.f32 %v517, %v549
        %v566 = vadd.f32 %v518, %v550
        %v567 = vadd.f32 %v519, %v551
        %v568 = vadd.f32 %v520, %v552
        %v569 = vadd.f32 %v553, %v459
        %v570 = vadd.f32 %v554, %v461
        %v571 = vadd.f32 %v555, %v465
        %v572 = vadd.f32 %v556, %v467
        %v573 = vadd.f32 %v557, %v471
        %v574 = vadd.f32 %v558, %v473
        %v575 = vadd.f32 %v559, %v477
        %v576 = vadd.f32 %v560, %v479
        %v577 = vadd.f32 %v561, %v483
        %v578 = vadd.f32 %v562, %v485
        %v579 = vadd.f32 %v563, %v489
        %v580 = vadd.f32 %v564, %v491
        %v581 = vadd.f32 %v565, %v495
        %v582 = vadd.f32 %v566, %v497
        %v583 = vadd.f32 %v567, %v501
        %v584 = vadd.f32 %v568, %v503
        %585 = vst [vmem:[%s307] sm:$0xff] %v569
        %586 = vst [vmem:[%s307 + $0x8] sm:$0xff] %v570
        %587 = vst [vmem:[%s307 + $0x10] sm:$0xff] %v571
        %588 = vst [vmem:[%s307 + $0x18] sm:$0xff] %v572
        %589 = vst [vmem:[%s307 + $0x20] sm:$0xff] %v573
        %590 = vst [vmem:[%s307 + $0x28] sm:$0xff] %v574
        %591 = vst [vmem:[%s307 + $0x30] sm:$0xff] %v575
        %592 = vst [vmem:[%s307 + $0x38] sm:$0xff] %v576
        %593 = vst [vmem:[%s307 + $0x40] sm:$0xff] %v577
        %594 = vst [vmem:[%s307 + $0x48] sm:$0xff] %v578
        %595 = vst [vmem:[%s307 + $0x50] sm:$0xff] %v579
        %596 = vst [vmem:[%s307 + $0x58] sm:$0xff] %v580
        %597 = vst [vmem:[%s307 + $0x60] sm:$0xff] %v581
        %598 = vst [vmem:[%s307 + $0x68] sm:$0xff] %v582
        %599 = vst [vmem:[%s307 + $0x70] sm:$0xff] %v583
        %600 = vst [vmem:[%s307 + $0x78] sm:$0xff] %v584
        %s601 = sand.u32 %s129, 1
        %s602 = scalar_lea.sflag [#allocation4], %s601
        %s603 = sand.u32 %s129, 1
        %s604 = smul.addr %s603, 128
        %s605 = scalar_lea.vmem [#allocation9], %s604
        // Predicated region
        $region53: #{tpu_custom_call.1} parent=35 // pred_check
          %p606 = pneg %p139
        $region54: #{tpu_custom_call.1} parent=35 // pred_check_branch
          %608 = sbr.rel (%p606) target = $region56
        $region55: #{tpu_custom_call.1} parent=35 // pred_region
          %s609 = smul.u32 8, %s22
          %s611 = ssub.s32 2048, 2048
          %612 = vsyncadd %s602, %s611
          %s613 = smul.addr %s609, 2
          %s614 = smul.addr %s613, 128
          %s615 = scalar_lea.hbm %s4, %s614
          %s616 = sshll.u32 %s605, 4
          %s617 = int_to_ptr.vmem [resolvable:$true] %s616
          %622 = dma.vmem_to_hbm [thread:$0]  %s617, 2048, %s615, %s602, 256, 256, 16
        $region56: #{tpu_custom_call.1} parent=35 // pred_fallthru
          _
      $region36: #{tpu_custom_call.1} parent=5 // pred_fallthru
        _
      %p623 = scmp.le.s32.totalorder 2, %s17
      // Predicated region
      $region57: #{tpu_custom_call.1} parent=5 // pred_check
        %p624 = pneg %p623
      $region58: #{tpu_custom_call.1} parent=5 // pred_check_branch
        %626 = sbr.rel (%p624) target = $region60
      $region59: #{tpu_custom_call.1} parent=5 // pred_region
        %s627 = ssub.s32 %s17, 2
        // Predicated region
        $region61: #{tpu_custom_call.1} parent=59 // pred_check
          %p628 = pneg %p145
        $region62: #{tpu_custom_call.1} parent=59 // pred_check_branch
          %630 = sbr.rel (%p628) target = $region64
        $region63: #{tpu_custom_call.1} parent=59 // pred_region
          %s631 = sand.u32 %s130, 1
          %s632 = scalar_lea.sflag [#allocation4], %s631
          %s633 = sand.u32 %s130, 1
          %s634 = smul.addr %s633, 128
          %s635 = scalar_lea.vmem [#allocation9], %s634
          %636 = dma.done %s632, 2048
        $region64: #{tpu_custom_call.1} parent=59 // pred_fallthru
          _
      $region60: #{tpu_custom_call.1} parent=5 // pred_fallthru
        _
    $region6: #{tpu_custom_call.1} parent=1 // loop_footer
      %s21 = sadd.s32 1, %s17
    $region7: #{tpu_custom_call.1} parent=1 // loop_footer_branch
      %16 = sbr.rel target = $region3
    $region8: #{tpu_custom_call.1} parent=1 // loop_exit
      _
    %637 = vsyncpa [#allocation3], 1
    %s638 = scalar_lea.sflag [#allocation3], 1
    %639 = vsyncpa %s638, 1
    %640 = vsyncpa [#allocation6], 1
    %641 = vsyncpa [#allocation4], 1
    %s642 = scalar_lea.sflag [#allocation4], 1
    %643 = vsyncpa %s642, 1

</llo_original>
